<compile_context>
chip_gen: v7x
topology: tpu7x:2x2x1
jax: 0.10.0
libtpu: 0.0.40
codegen_flags: <defaults>
</compile_context>

<pallas_src>
import jax
import jax.numpy as jnp
from jax.experimental import pallas as pl
from jax.experimental.pallas import tpu as pltpu


def _f3_kernel(x_ref, w_ref, b_ref, o_ref):
    # x_ref: (TB, K)  VMEM    w_ref: (K, 1)  VMEM    b_ref: (1, 1)  SMEM
    # o_ref: (TB, PP) VMEM    (PP = psize*psize, multiple of 128 -> lane-dense)
    x = x_ref[...].astype(jnp.float32)
    w = w_ref[...].astype(jnp.float32)
    # MXU matmul: K-reduction with f32 accumulation, then scalar bias from SMEM.
    s = jnp.dot(x, w, preferred_element_type=jnp.float32) + b_ref[0, 0]   # (TB, 1)
    y = jax.nn.sigmoid(s)                                                 # (TB, 1)
    o_ref[...] = jnp.broadcast_to(y, o_ref.shape).astype(o_ref.dtype)


def _pick_batch_tile(B, K, PP, bytes_per_elt=4, vmem_budget=8 << 20):
    # Largest power-of-two tile (multiple of 8) that divides B and keeps the
    # double-buffered working set small (v7x: 64 MiB physical / 32 MiB scoped).
    for tb in (512, 256, 128, 64, 32, 16, 8):
        if B % tb == 0 and 2 * tb * (K + PP) * bytes_per_elt <= vmem_budget:
            return tb
    return B  # small / odd batch: single full-array block


def f3_forward(x, conv_w, conv_b, ksize):
    """x: (B, C, H, W); conv_w: (1, C, 3, 3); conv_b: (1,). Returns (B, 1, psize, psize)."""
    B, C, H, W = x.shape
    psize = int(ksize[-1])
    mid = psize // 2
    assert psize >= 3, "crop window mid-1:mid+2 requires psize >= 3"
    assert mid - 1 >= 0 and H >= mid + 2 and W >= mid + 2, "spatial dims too small for crop"

    K = C * H * W
    PP = psize * psize

    # Free, contiguous reshape — no gather kernel, no extra HBM round-trip for x.
    x_flat = x.reshape(B, K)

    # Fold the 3x3 crop into the weights: zero everywhere except the crop window.
    w_eff = jnp.zeros((C, H, W), dtype=jnp.float32)
    w_eff = w_eff.at[:, mid - 1:mid + 2, mid - 1:mid + 2].set(
        conv_w.reshape(C, 3, 3).astype(jnp.float32))
    w_eff = w_eff.reshape(K, 1)

    b_smem = conv_b.reshape(1, 1).astype(jnp.float32)

    TB = _pick_batch_tile(B, K, PP)
    grid = (B // TB,)

    out_flat = pl.pallas_call(
        _f3_kernel,
        out_shape=jax.ShapeDtypeStruct((B, PP), x.dtype),
        grid=grid,
        in_specs=[
            pl.BlockSpec((TB, K), lambda i: (i, 0)),
            pl.BlockSpec((K, 1), lambda i: (0, 0)),
            pl.BlockSpec(memory_space=pltpu.MemorySpace.SMEM),
        ],
        out_specs=pl.BlockSpec((TB, PP), lambda i: (i, 0)),
        compiler_params=pltpu.CompilerParams(
            dimension_semantics=("parallel",)),  # shard batch grid across v7x TCs
    )(x_flat, w_eff, b_smem)

    return out_flat.reshape(B, 1, psize, psize)


if __name__ == "__main__":
    # Small shapes consistent with the module: ksize = (C, psize)
    B, C, psize = 2, 4, 16
    ksize = (C, psize)

    key = jax.random.PRNGKey(0)
    kx, kw, kb = jax.random.split(key, 3)

    x = jax.random.normal(kx, (B, C, psize, psize), dtype=jnp.float32)

    # Deterministic "Conv2d(C, 1, 3, 3)" parameters (synthetic, not a checkpoint).
    fan_in = C * 3 * 3
    bound = 1.0 / (fan_in ** 0.5)
    conv_w = jax.random.uniform(kw, (1, C, 3, 3), jnp.float32, -bound, bound)
    conv_b = jax.random.uniform(kb, (1,), jnp.float32, -bound, bound)

    out = f3_forward(x, conv_w, conv_b, ksize)
    jax.block_until_ready(out)

    # Sanity check against a pure-JAX reference of the same math.
    mid = psize // 2
    patch = x[:, :, mid - 1:mid + 2, mid - 1:mid + 2]
    ref = jax.nn.sigmoid(
        jnp.einsum("bcij,ocij->bo", patch, conv_w) + conv_b
    ).reshape(B, 1, 1, 1)
    ref = jnp.broadcast_to(ref, (B, 1, psize, psize))
    assert out.shape == (B, 1, psize, psize)
    assert jnp.allclose(out, ref, atol=1e-5), "mismatch vs reference"

    print("KERNEL_OK")
</pallas_src>

<mosaic_0001>
module attributes {stable_mosaic.version = 11 : i64} {
  func.func @_f3_kernel(%arg0: i32, %arg1: memref<2x1024xf32, #tpu.memory_space<vmem>>, %arg2: memref<1024x1xf32, #tpu.memory_space<vmem>>, %arg3: memref<1x1xf32, #tpu.memory_space<smem>>, %arg4: memref<2x256xf32, #tpu.memory_space<vmem>>) attributes {dimension_semantics = [#tpu.dimension_semantics<parallel>], iteration_bounds = array<i64: 1>, scalar_prefetch = 0 : i64, scratch_operands = 0 : i64, tpu.core_type = #tpu.core_type<tc>, window_params = [{transform_indices = @transform_0, window_bounds = array<i64: 2, 1024>}, {pipeline_mode = #tpu.pipeline_mode<synchronous>, transform_indices = @transform_1, window_bounds = array<i64: 1024, 1>}, {transform_indices = @transform_2, window_bounds = array<i64: 1, 1>}, {transform_indices = @transform_3, window_bounds = array<i64: 2, 256>}]} {
    %c0 = arith.constant 0 : index
    %c0_0 = arith.constant 0 : index
    %0 = vector.load %arg1[%c0, %c0_0] : memref<2x1024xf32, #tpu.memory_space<vmem>>, vector<2x1024xf32>
    %c0_1 = arith.constant 0 : index
    %c0_2 = arith.constant 0 : index
    %1 = vector.load %arg2[%c0_1, %c0_2] : memref<1024x1xf32, #tpu.memory_space<vmem>>, vector<1024x1xf32>
    %cst = arith.constant dense<0.000000e+00> : vector<2x1xf32>
    %2 = tpu.matmul %0, %1, %cst {dimension_numbers = #tpu.dot_dimension_numbers<[1], [0], [0], [1], [0, 0, 1, 1], [], []>} : vector<2x1024xf32>, vector<1024x1xf32>, vector<2x1xf32> -> vector<2x1xf32>
    %c0_3 = arith.constant 0 : index
    %c0_4 = arith.constant 0 : index
    %3 = memref.load %arg3[%c0_3, %c0_4] : memref<1x1xf32, #tpu.memory_space<smem>>
    %4 = vector.broadcast %3 : f32 to vector<2x1xf32>
    %5 = arith.addf %2, %4 : vector<2x1xf32>
    %6 = arith.negf %5 : vector<2x1xf32>
    %7 = math.exp %6 : vector<2x1xf32>
    %cst_5 = arith.constant 1.000000e+00 : f32
    %8 = vector.broadcast %cst_5 : f32 to vector<2x1xf32>
    %9 = arith.addf %8, %7 : vector<2x1xf32>
    %10 = arith.divf %8, %9 : vector<2x1xf32>
    %11 = vector.shape_cast %10 : vector<2x1xf32> to vector<2x1xf32>
    %12 = vector.broadcast %11 : vector<2x1xf32> to vector<2x256xf32>
    %c0_6 = arith.constant 0 : index
    %c0_7 = arith.constant 0 : index
    %13 = vector.load %arg4[%c0_6, %c0_7] : memref<2x256xf32, #tpu.memory_space<vmem>>, vector<2x256xf32>
    tpu.vector_store %arg4[%c0_6, %c0_7], %12 {strides = array<i32>} : memref<2x256xf32, #tpu.memory_space<vmem>>, vector<2x256xf32>,
    return
  }
  func.func @transform_0(%arg0: i32) -> (i32, i32) {
    %c0_i32 = arith.constant 0 : i32
    %c0_i32_0 = arith.constant 0 : i32
    return %arg0, %c0_i32 : i32, i32
  }
  func.func @transform_1(%arg0: i32) -> (i32, i32) {
    %c0_i32 = arith.constant 0 : i32
    %c0_i32_0 = arith.constant 0 : i32
    %c0_i32_1 = arith.constant 0 : i32
    return %c0_i32, %c0_i32_0 : i32, i32
  }
  func.func @transform_2(%arg0: i32) -> (i32, i32) {
    %c0_i32 = arith.constant 0 : i32
    %c0_i32_0 = arith.constant 0 : i32
    %c0_i32_1 = arith.constant 0 : i32
    return %c0_i32, %c0_i32_0 : i32, i32
  }
  func.func @transform_3(%arg0: i32) -> (i32, i32) {
    %c0_i32 = arith.constant 0 : i32
    %c0_i32_0 = arith.constant 0 : i32
    return %arg0, %c0_i32 : i32, i32
  }
}

</mosaic_0001>

<llo_original>
// kernel: tpu_custom_call.1
$region0: #{tpu_custom_call.1}
  #allocation0 [shape = 'u32[]', space=smem, size = 0x4, offset = 0x4, fixed_abs, tag = 'smem constant byte address 0x4 - core index']
  #allocation1 [shape = 'u32[144,128]{1,0:T(1,128)}', space=vmem, size = 0x12000, scoped, tag = 'internal scratch']
  #allocation2 [shape = 'f32[1,1]{1,0:T(1,128)S(6)}', space=smem, size = 0x200, scoped, tag = 'scoped memory for tpu_custom_call.1']
  %s0 = inlined_call_operand.vmem [shape: f32[2,1024], index: 0, kind: input, shape index: {}]
  %s1 = inlined_call_operand.vmem [shape: f32[1024,1], index: 1, kind: input, shape index: {}]
  %s2 = inlined_call_operand.<no memory space> [shape: f32[1,1], index: 2, kind: input, shape index: {}]
  %s3 = inlined_call_operand.hbm [shape: f32[2,256], index: 3, kind: output, shape index: {}]
  %s4 = sld [smem:[#allocation0]]
  $region22: #{tpu_custom_call.1} parent=0
    _
  %s6 = ssub.s32 1, %s4
  %s7 = scalar_select 0, %s6, %s4
  %8 = sst [smem:[#allocation2]] %s2
  $region1: #{tpu_custom_call.1} parent=0
    #allocation3 [shape = 'u8[2048]{0}', space=vmem, size = 0x800, scoped, tag = 'output window, operand 0, single buffered']
    #allocation4 [shape = 's32[1]{0}', space=sflag, size = 0x4, scoped, tag = 'scoped memory for tpu_custom_call.1']
    %9 = vsyncpa [#allocation4], 0
    // Predicated region
    $region2: #{tpu_custom_call.1} parent=1 // pred_check
      _
    $region3: #{tpu_custom_call.1} parent=1 // pred_check_branch
      %11 = sbr.rel (0) target = $region5
    $region4: #{tpu_custom_call.1} parent=1 // pred_region
      _
    $region5: #{tpu_custom_call.1} parent=1 // pred_fallthru
      _
    // Predicated region
    $region6: #{tpu_custom_call.1} parent=1 // pred_check
      _
    $region7: #{tpu_custom_call.1} parent=1 // pred_check_branch
      %13 = sbr.rel (0) target = $region9
    $region8: #{tpu_custom_call.1} parent=1 // pred_region
      _
    $region9: #{tpu_custom_call.1} parent=1 // pred_fallthru
      _
    // Predicated region
    $region10: #{tpu_custom_call.1} parent=1 // pred_check
      _
    $region11: #{tpu_custom_call.1} parent=1 // pred_check_branch
      %15 = sbr.rel (0) target = $region13
    $region12: #{tpu_custom_call.1} parent=1 // pred_region
      _
    $region13: #{tpu_custom_call.1} parent=1 // pred_fallthru
      _
    %v16 = vld [vmem:[%s0] sm:$0xff]
    %v17 = vld [vmem:[%s0 + $0x8] sm:$0xff]
    %v18 = vld [vmem:[%s1] sm:$0xff]
    %v19 = vld [vmem:[%s1 + $0x8] sm:$0xff]
    %v20 = vld [vmem:[%s1 + $0x10] sm:$0xff]
    %v21 = vld [vmem:[%s1 + $0x18] sm:$0xff]
    %v22 = vld [vmem:[%s1 + $0x20] sm:$0xff]
    %v23 = vld [vmem:[%s1 + $0x28] sm:$0xff]
    %v24 = vld [vmem:[%s1 + $0x30] sm:$0xff]
    %v25 = vld [vmem:[%s1 + $0x38] sm:$0xff]
    %v26 = vld [vmem:[%s1 + $0x40] sm:$0xff]
    %v27 = vld [vmem:[%s1 + $0x48] sm:$0xff]
    %v28 = vld [vmem:[%s1 + $0x50] sm:$0xff]
    %v29 = vld [vmem:[%s1 + $0x58] sm:$0xff]
    %v30 = vld [vmem:[%s1 + $0x60] sm:$0xff]
    %v31 = vld [vmem:[%s1 + $0x68] sm:$0xff]
    %v32 = vld [vmem:[%s1 + $0x70] sm:$0xff]
    %v33 = vld [vmem:[%s1 + $0x78] sm:$0xff]
    %v34 = vld [vmem:[%s1 + $0x80] sm:$0xff]
    %v35 = vld [vmem:[%s1 + $0x88] sm:$0xff]
    %v36 = vld [vmem:[%s1 + $0x90] sm:$0xff]
    %v37 = vld [vmem:[%s1 + $0x98] sm:$0xff]
    %v38 = vld [vmem:[%s1 + $0xa0] sm:$0xff]
    %v39 = vld [vmem:[%s1 + $0xa8] sm:$0xff]
    %v40 = vld [vmem:[%s1 + $0xb0] sm:$0xff]
    %v41 = vld [vmem:[%s1 + $0xb8] sm:$0xff]
    %v42 = vld [vmem:[%s1 + $0xc0] sm:$0xff]
    %v43 = vld [vmem:[%s1 + $0xc8] sm:$0xff]
    %v44 = vld [vmem:[%s1 + $0xd0] sm:$0xff]
    %v45 = vld [vmem:[%s1 + $0xd8] sm:$0xff]
    %v46 = vld [vmem:[%s1 + $0xe0] sm:$0xff]
    %v47 = vld [vmem:[%s1 + $0xe8] sm:$0xff]
    %v48 = vld [vmem:[%s1 + $0xf0] sm:$0xff]
    %v49 = vld [vmem:[%s1 + $0xf8] sm:$0xff]
    %v50 = vld [vmem:[%s1 + $0x100] sm:$0xff]
    %v51 = vld [vmem:[%s1 + $0x108] sm:$0xff]
    %v52 = vld [vmem:[%s1 + $0x110] sm:$0xff]
    %v53 = vld [vmem:[%s1 + $0x118] sm:$0xff]
    %v54 = vld [vmem:[%s1 + $0x120] sm:$0xff]
    %v55 = vld [vmem:[%s1 + $0x128] sm:$0xff]
    %v56 = vld [vmem:[%s1 + $0x130] sm:$0xff]
    %v57 = vld [vmem:[%s1 + $0x138] sm:$0xff]
    %v58 = vld [vmem:[%s1 + $0x140] sm:$0xff]
    %v59 = vld [vmem:[%s1 + $0x148] sm:$0xff]
    %v60 = vld [vmem:[%s1 + $0x150] sm:$0xff]
    %v61 = vld [vmem:[%s1 + $0x158] sm:$0xff]
    %v62 = vld [vmem:[%s1 + $0x160] sm:$0xff]
    %v63 = vld [vmem:[%s1 + $0x168] sm:$0xff]
    %v64 = vld [vmem:[%s1 + $0x170] sm:$0xff]
    %v65 = vld [vmem:[%s1 + $0x178] sm:$0xff]
    %v66 = vld [vmem:[%s1 + $0x180] sm:$0xff]
    %v67 = vld [vmem:[%s1 + $0x188] sm:$0xff]
    %v68 = vld [vmem:[%s1 + $0x190] sm:$0xff]
    %v69 = vld [vmem:[%s1 + $0x198] sm:$0xff]
    %v70 = vld [vmem:[%s1 + $0x1a0] sm:$0xff]
    %v71 = vld [vmem:[%s1 + $0x1a8] sm:$0xff]
    %v72 = vld [vmem:[%s1 + $0x1b0] sm:$0xff]
    %v73 = vld [vmem:[%s1 + $0x1b8] sm:$0xff]
    %v74 = vld [vmem:[%s1 + $0x1c0] sm:$0xff]
    %v75 = vld [vmem:[%s1 + $0x1c8] sm:$0xff]
    %v76 = vld [vmem:[%s1 + $0x1d0] sm:$0xff]
    %v77 = vld [vmem:[%s1 + $0x1d8] sm:$0xff]
    %v78 = vld [vmem:[%s1 + $0x1e0] sm:$0xff]
    %v79 = vld [vmem:[%s1 + $0x1e8] sm:$0xff]
    %v80 = vld [vmem:[%s1 + $0x1f0] sm:$0xff]
    %v81 = vld [vmem:[%s1 + $0x1f8] sm:$0xff]
    %v82 = vld [vmem:[%s1 + $0x200] sm:$0xff]
    %v83 = vld [vmem:[%s1 + $0x208] sm:$0xff]
    %v84 = vld [vmem:[%s1 + $0x210] sm:$0xff]
    %v85 = vld [vmem:[%s1 + $0x218] sm:$0xff]
    %v86 = vld [vmem:[%s1 + $0x220] sm:$0xff]
    %v87 = vld [vmem:[%s1 + $0x228] sm:$0xff]
    %v88 = vld [vmem:[%s1 + $0x230] sm:$0xff]
    %v89 = vld [vmem:[%s1 + $0x238] sm:$0xff]
    %v90 = vld [vmem:[%s1 + $0x240] sm:$0xff]
    %v91 = vld [vmem:[%s1 + $0x248] sm:$0xff]
    %v92 = vld [vmem:[%s1 + $0x250] sm:$0xff]
    %v93 = vld [vmem:[%s1 + $0x258] sm:$0xff]
    %v94 = vld [vmem:[%s1 + $0x260] sm:$0xff]
    %v95 = vld [vmem:[%s1 + $0x268] sm:$0xff]
    %v96 = vld [vmem:[%s1 + $0x270] sm:$0xff]
    %v97 = vld [vmem:[%s1 + $0x278] sm:$0xff]
    %v98 = vld [vmem:[%s1 + $0x280] sm:$0xff]
    %v99 = vld [vmem:[%s1 + $0x288] sm:$0xff]
    %v100 = vld [vmem:[%s1 + $0x290] sm:$0xff]
    %v101 = vld [vmem:[%s1 + $0x298] sm:$0xff]
    %v102 = vld [vmem:[%s1 + $0x2a0] sm:$0xff]
    %v103 = vld [vmem:[%s1 + $0x2a8] sm:$0xff]
    %v104 = vld [vmem:[%s1 + $0x2b0] sm:$0xff]
    %v105 = vld [vmem:[%s1 + $0x2b8] sm:$0xff]
    %v106 = vld [vmem:[%s1 + $0x2c0] sm:$0xff]
    %v107 = vld [vmem:[%s1 + $0x2c8] sm:$0xff]
    %v108 = vld [vmem:[%s1 + $0x2d0] sm:$0xff]
    %v109 = vld [vmem:[%s1 + $0x2d8] sm:$0xff]
    %v110 = vld [vmem:[%s1 + $0x2e0] sm:$0xff]
    %v111 = vld [vmem:[%s1 + $0x2e8] sm:$0xff]
    %v112 = vld [vmem:[%s1 + $0x2f0] sm:$0xff]
    %v113 = vld [vmem:[%s1 + $0x2f8] sm:$0xff]
    %v114 = vld [vmem:[%s1 + $0x300] sm:$0xff]
    %v115 = vld [vmem:[%s1 + $0x308] sm:$0xff]
    %v116 = vld [vmem:[%s1 + $0x310] sm:$0xff]
    %v117 = vld [vmem:[%s1 + $0x318] sm:$0xff]
    %v118 = vld [vmem:[%s1 + $0x320] sm:$0xff]
    %v119 = vld [vmem:[%s1 + $0x328] sm:$0xff]
    %v120 = vld [vmem:[%s1 + $0x330] sm:$0xff]
    %v121 = vld [vmem:[%s1 + $0x338] sm:$0xff]
    %v122 = vld [vmem:[%s1 + $0x340] sm:$0xff]
    %v123 = vld [vmem:[%s1 + $0x348] sm:$0xff]
    %v124 = vld [vmem:[%s1 + $0x350] sm:$0xff]
    %v125 = vld [vmem:[%s1 + $0x358] sm:$0xff]
    %v126 = vld [vmem:[%s1 + $0x360] sm:$0xff]
    %v127 = vld [vmem:[%s1 + $0x368] sm:$0xff]
    %v128 = vld [vmem:[%s1 + $0x370] sm:$0xff]
    %v129 = vld [vmem:[%s1 + $0x378] sm:$0xff]
    %v130 = vld [vmem:[%s1 + $0x380] sm:$0xff]
    %v131 = vld [vmem:[%s1 + $0x388] sm:$0xff]
    %v132 = vld [vmem:[%s1 + $0x390] sm:$0xff]
    %v133 = vld [vmem:[%s1 + $0x398] sm:$0xff]
    %v134 = vld [vmem:[%s1 + $0x3a0] sm:$0xff]
    %v135 = vld [vmem:[%s1 + $0x3a8] sm:$0xff]
    %v136 = vld [vmem:[%s1 + $0x3b0] sm:$0xff]
    %v137 = vld [vmem:[%s1 + $0x3b8] sm:$0xff]
    %v138 = vld [vmem:[%s1 + $0x3c0] sm:$0xff]
    %v139 = vld [vmem:[%s1 + $0x3c8] sm:$0xff]
    %v140 = vld [vmem:[%s1 + $0x3d0] sm:$0xff]
    %v141 = vld [vmem:[%s1 + $0x3d8] sm:$0xff]
    %v142 = vld [vmem:[%s1 + $0x3e0] sm:$0xff]
    %v143 = vld [vmem:[%s1 + $0x3e8] sm:$0xff]
    %v144 = vld [vmem:[%s1 + $0x3f0] sm:$0xff]
    %v145 = vld [vmem:[%s1 + $0x3f8] sm:$0xff]
    %s146 = sld [smem:[#allocation2]]
    %v147 = vstv %s146
    %v150 = vcombine.high %v16, %v16
    %v152 = vunpack.c.l.s4 1983009808
    %v153 = vunpack.c.0.s8 %v152
    %v154 = vlaneseq
    %v155 = vshrl.u32 %v154, 7
    %v156 = vsub.s32 %v153, %v155
    %v157 = vrot.slane %v16, %v156
    %v159 = vunpack.c.l.s4 1983009808
    %v160 = vunpack.c.0.s8 %v159
    %v161 = vlaneseq
    %v162 = vshrl.u32 %v161, 7
    %v163 = vsub.s32 %v160, %v162
    %v164 = vrot.slane %v150, %v163
    %v165 = vcombine.high %v157, %v157
    %v166 = vcombine.high %v164, %v164
    %v167 = vcombine.high %v17, %v17
    %v169 = vunpack.c.l.s4 1983009808
    %v170 = vunpack.c.0.s8 %v169
    %v171 = vlaneseq
    %v172 = vshrl.u32 %v171, 7
    %v173 = vsub.s32 %v170, %v172
    %v174 = vrot.slane %v17, %v173
    %v176 = vunpack.c.l.s4 1983009808
    %v177 = vunpack.c.0.s8 %v176
    %v178 = vlaneseq
    %v179 = vshrl.u32 %v178, 7
    %v180 = vsub.s32 %v177, %v179
    %v181 = vrot.slane %v167, %v180
    %v182 = vcombine.high %v174, %v174
    %v183 = vcombine.high %v181, %v181
    %192 = vmatprep.subr.mxu0 0.0
    %193 = vmatpush1.msra.mxu0 %v18
    %194 = vmatprep.subr.mxu0 0.0
    %195 = vmatpush1.msra.mxu0 %v19
    %196 = vmatprep.subr.mxu0 0.0
    %197 = vmatpush1.msra.mxu0 %v20
    %198 = vmatprep.subr.mxu0 0.0
    %199 = vmatpush1.msra.mxu0 %v21
    %200 = vmatprep.subr.mxu0 0.0
    %201 = vmatpush1.msra.mxu0 %v22
    %202 = vmatprep.subr.mxu0 0.0
    %203 = vmatpush1.msra.mxu0 %v23
    %204 = vmatprep.subr.mxu0 0.0
    %205 = vmatpush1.msra.mxu0 %v24
    %206 = vmatprep.subr.mxu0 0.0
    %207 = vmatpush1.msra.mxu0 %v25
    %208 = vmatprep.subr.mxu0 0.0
    %209 = vmatpush1.msra.mxu0 %v26
    %210 = vmatprep.subr.mxu0 0.0
    %211 = vmatpush1.msra.mxu0 %v27
    %212 = vmatprep.subr.mxu0 0.0
    %213 = vmatpush1.msra.mxu0 %v28
    %214 = vmatprep.subr.mxu0 0.0
    %215 = vmatpush1.msra.mxu0 %v29
    %216 = vmatprep.subr.mxu0 0.0
    %217 = vmatpush1.msra.mxu0 %v30
    %218 = vmatprep.subr.mxu0 0.0
    %219 = vmatpush1.msra.mxu0 %v31
    %220 = vmatprep.subr.mxu0 0.0
    %221 = vmatpush1.msra.mxu0 %v32
    %222 = vmatprep.subr.mxu0 0.0
    %223 = vmatpush1.msra.mxu0 %v33
    %224 = vmatprep.subr.mxu0 0.0
    %225 = vmatpush1.msra.mxu0 %v34
    %226 = vmatprep.subr.mxu0 0.0
    %227 = vmatpush1.msra.mxu0 %v35
    %228 = vmatprep.subr.mxu0 0.0
    %229 = vmatpush1.msra.mxu0 %v36
    %230 = vmatprep.subr.mxu0 0.0
    %231 = vmatpush1.msra.mxu0 %v37
    %232 = vmatprep.subr.mxu0 0.0
    %233 = vmatpush1.msra.mxu0 %v38
    %234 = vmatprep.subr.mxu0 0.0
    %235 = vmatpush1.msra.mxu0 %v39
    %236 = vmatprep.subr.mxu0 0.0
    %237 = vmatpush1.msra.mxu0 %v40
    %238 = vmatprep.subr.mxu0 0.0
    %239 = vmatpush1.msra.mxu0 %v41
    %240 = vmatprep.subr.mxu0 0.0
    %241 = vmatpush1.msra.mxu0 %v42
    %242 = vmatprep.subr.mxu0 0.0
    %243 = vmatpush1.msra.mxu0 %v43
    %244 = vmatprep.subr.mxu0 0.0
    %245 = vmatpush1.msra.mxu0 %v44
    %246 = vmatprep.subr.mxu0 0.0
    %247 = vmatpush1.msra.mxu0 %v45
    %248 = vmatprep.subr.mxu0 0.0
    %249 = vmatpush1.msra.mxu0 %v46
    %250 = vmatprep.subr.mxu0 0.0
    %251 = vmatpush1.msra.mxu0 %v47
    %252 = vmatprep.subr.mxu0 0.0
    %253 = vmatpush1.msra.mxu0 %v48
    %254 = vmatprep.subr.mxu0 0.0
    %255 = vmatpush1.msra.mxu0 %v49
    %256 = vmatprep.mubr.f32.mxu0 %v165
    %257 = vmatmul.mubr.f32.gmra.mrb[0].mxu0 %v157
    %v258 = vpop.f32.mrb[0].mxu0
    %v259 = vadd.f32 %v147, %v258
    %v260 = vpop.f32.mrb[0].mxu0
    %261 = vdwg.mxu0
    %262 = vmatprep.subr.mxu0 0.0
    %263 = vmatpush1.msra.mxu0 %v50
    %264 = vmatprep.subr.mxu0 0.0
    %265 = vmatpush1.msra.mxu0 %v51
    %266 = vmatprep.subr.mxu0 0.0
    %267 = vmatpush1.msra.mxu0 %v52
    %268 = vmatprep.subr.mxu0 0.0
    %269 = vmatpush1.msra.mxu0 %v53
    %270 = vmatprep.subr.mxu0 0.0
    %271 = vmatpush1.msra.mxu0 %v54
    %272 = vmatprep.subr.mxu0 0.0
    %273 = vmatpush1.msra.mxu0 %v55
    %274 = vmatprep.subr.mxu0 0.0
    %275 = vmatpush1.msra.mxu0 %v56
    %276 = vmatprep.subr.mxu0 0.0
    %277 = vmatpush1.msra.mxu0 %v57
    %278 = vmatprep.subr.mxu0 0.0
    %279 = vmatpush1.msra.mxu0 %v58
    %280 = vmatprep.subr.mxu0 0.0
    %281 = vmatpush1.msra.mxu0 %v59
    %282 = vmatprep.subr.mxu0 0.0
    %283 = vmatpush1.msra.mxu0 %v60
    %284 = vmatprep.subr.mxu0 0.0
    %285 = vmatpush1.msra.mxu0 %v61
    %286 = vmatprep.subr.mxu0 0.0
    %287 = vmatpush1.msra.mxu0 %v62
    %288 = vmatprep.subr.mxu0 0.0
    %289 = vmatpush1.msra.mxu0 %v63
    %290 = vmatprep.subr.mxu0 0.0
    %291 = vmatpush1.msra.mxu0 %v64
    %292 = vmatprep.subr.mxu0 0.0
    %293 = vmatpush1.msra.mxu0 %v65
    %294 = vmatprep.subr.mxu0 0.0
    %295 = vmatpush1.msra.mxu0 %v66
    %296 = vmatprep.subr.mxu0 0.0
    %297 = vmatpush1.msra.mxu0 %v67
    %298 = vmatprep.subr.mxu0 0.0
    %299 = vmatpush1.msra.mxu0 %v68
    %300 = vmatprep.subr.mxu0 0.0
    %301 = vmatpush1.msra.mxu0 %v69
    %302 = vmatprep.subr.mxu0 0.0
    %303 = vmatpush1.msra.mxu0 %v70
    %304 = vmatprep.subr.mxu0 0.0
    %305 = vmatpush1.msra.mxu0 %v71
    %306 = vmatprep.subr.mxu0 0.0
    %307 = vmatpush1.msra.mxu0 %v72
    %308 = vmatprep.subr.mxu0 0.0
    %309 = vmatpush1.msra.mxu0 %v73
    %310 = vmatprep.subr.mxu0 0.0
    %311 = vmatpush1.msra.mxu0 %v74
    %312 = vmatprep.subr.mxu0 0.0
    %313 = vmatpush1.msra.mxu0 %v75
    %314 = vmatprep.subr.mxu0 0.0
    %315 = vmatpush1.msra.mxu0 %v76
    %316 = vmatprep.subr.mxu0 0.0
    %317 = vmatpush1.msra.mxu0 %v77
    %318 = vmatprep.subr.mxu0 0.0
    %319 = vmatpush1.msra.mxu0 %v78
    %320 = vmatprep.subr.mxu0 0.0
    %321 = vmatpush1.msra.mxu0 %v79
    %322 = vmatprep.subr.mxu0 0.0
    %323 = vmatpush1.msra.mxu0 %v80
    %324 = vmatprep.subr.mxu0 0.0
    %325 = vmatpush1.msra.mxu0 %v81
    %326 = vmatprep.mubr.f32.mxu0 %v166
    %327 = vmatmul.mubr.f32.gmra.mrb[0].mxu0 %v164
    %v328 = vpop.f32.mrb[0].mxu0
    %v329 = vadd.f32 %v259, %v328
    %v330 = vpop.f32.mrb[0].mxu0
    %331 = vdwg.mxu0
    %332 = vmatprep.subr.mxu0 0.0
    %333 = vmatpush1.msra.mxu0 %v82
    %334 = vmatprep.subr.mxu0 0.0
    %335 = vmatpush1.msra.mxu0 %v83
    %336 = vmatprep.subr.mxu0 0.0
    %337 = vmatpush1.msra.mxu0 %v84
    %338 = vmatprep.subr.mxu0 0.0
    %339 = vmatpush1.msra.mxu0 %v85
    %340 = vmatprep.subr.mxu0 0.0
    %341 = vmatpush1.msra.mxu0 %v86
    %342 = vmatprep.subr.mxu0 0.0
    %343 = vmatpush1.msra.mxu0 %v87
    %344 = vmatprep.subr.mxu0 0.0
    %345 = vmatpush1.msra.mxu0 %v88
    %346 = vmatprep.subr.mxu0 0.0
    %347 = vmatpush1.msra.mxu0 %v89
    %348 = vmatprep.subr.mxu0 0.0
    %349 = vmatpush1.msra.mxu0 %v90
    %350 = vmatprep.subr.mxu0 0.0
    %351 = vmatpush1.msra.mxu0 %v91
    %352 = vmatprep.subr.mxu0 0.0
    %353 = vmatpush1.msra.mxu0 %v92
    %354 = vmatprep.subr.mxu0 0.0
    %355 = vmatpush1.msra.mxu0 %v93
    %356 = vmatprep.subr.mxu0 0.0
    %357 = vmatpush1.msra.mxu0 %v94
    %358 = vmatprep.subr.mxu0 0.0
    %359 = vmatpush1.msra.mxu0 %v95
    %360 = vmatprep.subr.mxu0 0.0
    %361 = vmatpush1.msra.mxu0 %v96
    %362 = vmatprep.subr.mxu0 0.0
    %363 = vmatpush1.msra.mxu0 %v97
    %364 = vmatprep.subr.mxu0 0.0
    %365 = vmatpush1.msra.mxu0 %v98
    %366 = vmatprep.subr.mxu0 0.0
    %367 = vmatpush1.msra.mxu0 %v99
    %368 = vmatprep.subr.mxu0 0.0
    %369 = vmatpush1.msra.mxu0 %v100
    %370 = vmatprep.subr.mxu0 0.0
    %371 = vmatpush1.msra.mxu0 %v101
    %372 = vmatprep.subr.mxu0 0.0
    %373 = vmatpush1.msra.mxu0 %v102
    %374 = vmatprep.subr.mxu0 0.0
    %375 = vmatpush1.msra.mxu0 %v103
    %376 = vmatprep.subr.mxu0 0.0
    %377 = vmatpush1.msra.mxu0 %v104
    %378 = vmatprep.subr.mxu0 0.0
    %379 = vmatpush1.msra.mxu0 %v105
    %380 = vmatprep.subr.mxu0 0.0
    %381 = vmatpush1.msra.mxu0 %v106
    %382 = vmatprep.subr.mxu0 0.0
    %383 = vmatpush1.msra.mxu0 %v107
    %384 = vmatprep.subr.mxu0 0.0
    %385 = vmatpush1.msra.mxu0 %v108
    %386 = vmatprep.subr.mxu0 0.0
    %387 = vmatpush1.msra.mxu0 %v109
    %388 = vmatprep.subr.mxu0 0.0
    %389 = vmatpush1.msra.mxu0 %v110
    %390 = vmatprep.subr.mxu0 0.0
    %391 = vmatpush1.msra.mxu0 %v111
    %392 = vmatprep.subr.mxu0 0.0
    %393 = vmatpush1.msra.mxu0 %v112
    %394 = vmatprep.subr.mxu0 0.0
    %395 = vmatpush1.msra.mxu0 %v113
    %396 = vmatprep.mubr.f32.mxu0 %v182
    %397 = vmatmul.mubr.f32.gmra.mrb[0].mxu0 %v174
    %v398 = vpop.f32.mrb[0].mxu0
    %v399 = vadd.f32 %v329, %v398
    %v400 = vpop.f32.mrb[0].mxu0
    %401 = vdwg.mxu0
    %402 = vmatprep.subr.mxu0 0.0
    %403 = vmatpush1.msra.mxu0 %v114
    %404 = vmatprep.subr.mxu0 0.0
    %405 = vmatpush1.msra.mxu0 %v115
    %406 = vmatprep.subr.mxu0 0.0
    %407 = vmatpush1.msra.mxu0 %v116
    %408 = vmatprep.subr.mxu0 0.0
    %409 = vmatpush1.msra.mxu0 %v117
    %410 = vmatprep.subr.mxu0 0.0
    %411 = vmatpush1.msra.mxu0 %v118
    %412 = vmatprep.subr.mxu0 0.0
    %413 = vmatpush1.msra.mxu0 %v119
    %414 = vmatprep.subr.mxu0 0.0
    %415 = vmatpush1.msra.mxu0 %v120
    %416 = vmatprep.subr.mxu0 0.0
    %417 = vmatpush1.msra.mxu0 %v121
    %418 = vmatprep.subr.mxu0 0.0
    %419 = vmatpush1.msra.mxu0 %v122
    %420 = vmatprep.subr.mxu0 0.0
    %421 = vmatpush1.msra.mxu0 %v123
    %422 = vmatprep.subr.mxu0 0.0
    %423 = vmatpush1.msra.mxu0 %v124
    %424 = vmatprep.subr.mxu0 0.0
    %425 = vmatpush1.msra.mxu0 %v125
    %426 = vmatprep.subr.mxu0 0.0
    %427 = vmatpush1.msra.mxu0 %v126
    %428 = vmatprep.subr.mxu0 0.0
    %429 = vmatpush1.msra.mxu0 %v127
    %430 = vmatprep.subr.mxu0 0.0
    %431 = vmatpush1.msra.mxu0 %v128
    %432 = vmatprep.subr.mxu0 0.0
    %433 = vmatpush1.msra.mxu0 %v129
    %434 = vmatprep.subr.mxu0 0.0
    %435 = vmatpush1.msra.mxu0 %v130
    %436 = vmatprep.subr.mxu0 0.0
    %437 = vmatpush1.msra.mxu0 %v131
    %438 = vmatprep.subr.mxu0 0.0
    %439 = vmatpush1.msra.mxu0 %v132
    %440 = vmatprep.subr.mxu0 0.0
    %441 = vmatpush1.msra.mxu0 %v133
    %442 = vmatprep.subr.mxu0 0.0
    %443 = vmatpush1.msra.mxu0 %v134
    %444 = vmatprep.subr.mxu0 0.0
    %445 = vmatpush1.msra.mxu0 %v135
    %446 = vmatprep.subr.mxu0 0.0
    %447 = vmatpush1.msra.mxu0 %v136
    %448 = vmatprep.subr.mxu0 0.0
    %449 = vmatpush1.msra.mxu0 %v137
    %450 = vmatprep.subr.mxu0 0.0
    %451 = vmatpush1.msra.mxu0 %v138
    %452 = vmatprep.subr.mxu0 0.0
    %453 = vmatpush1.msra.mxu0 %v139
    %454 = vmatprep.subr.mxu0 0.0
    %455 = vmatpush1.msra.mxu0 %v140
    %456 = vmatprep.subr.mxu0 0.0
    %457 = vmatpush1.msra.mxu0 %v141
    %458 = vmatprep.subr.mxu0 0.0
    %459 = vmatpush1.msra.mxu0 %v142
    %460 = vmatprep.subr.mxu0 0.0
    %461 = vmatpush1.msra.mxu0 %v143
    %462 = vmatprep.subr.mxu0 0.0
    %463 = vmatpush1.msra.mxu0 %v144
    %464 = vmatprep.subr.mxu0 0.0
    %465 = vmatpush1.msra.mxu0 %v145
    %466 = vmatprep.mubr.f32.mxu0 %v183
    %467 = vmatmul.mubr.f32.gmra.mrb[0].mxu0 %v181
    %v468 = vpop.f32.mrb[0].mxu0
    %v469 = vadd.f32 %v399, %v468
    %v470 = vpop.f32.mrb[0].mxu0
    %471 = vdwg.mxu0
    %v472 = vxor.u32 %v469, 2147483648
    %v473 = vmul.f32 %v472, 1.442695
    %v474 = vpow.pop %v473
    %v475 = vadd.f32 %v474, 1.0
    %v476 = vrcp.pop %v475
    %v477 = vmul.f32 1.0, %v476
    %479 = vset.pattern.permute.xlu0 0
    %480 = vperm.xlu0 %479, %v477
    %v481 = vpop.permute.xlu0 %480
    %v483 = vunpack.c.l.s4 269488144
    %v484 = vunpack.c.0.s8 %v483
    %v485 = vlaneseq
    %v486 = vshrl.u32 %v485, 7
    %v487 = vsub.s32 %v484, %v486
    %v488 = vrot.slane %v481, %v487
    %490 = vst [vmem:[#allocation3] sm:$0xf] %v488
    // Predicated region
    $region14: #{tpu_custom_call.1} parent=1 // pred_check
      _
    $region15: #{tpu_custom_call.1} parent=1 // pred_check_branch
      %492 = sbr.rel (0) target = $region17
    $region16: #{tpu_custom_call.1} parent=1 // pred_region
      %s494 = ssub.s32 64, 64
      %495 = vsyncadd [#allocation4], %s494
      %s497 = sshll.u32 [#allocation3], 4
      %s498 = int_to_ptr.vmem [resolvable:$true] %s497
      %500 = dma.vmem_to_hbm [thread:$0]  %s498, 64, %s3, [#allocation4]
    $region17: #{tpu_custom_call.1} parent=1 // pred_fallthru
      _
    // Predicated region
    $region18: #{tpu_custom_call.1} parent=1 // pred_check
      _
    $region19: #{tpu_custom_call.1} parent=1 // pred_check_branch
      %502 = sbr.rel (0) target = $region21
    $region20: #{tpu_custom_call.1} parent=1 // pred_region
      %503 = dma.done [#allocation4], 64
    $region21: #{tpu_custom_call.1} parent=1 // pred_fallthru
      _
    %504 = vsyncpa [#allocation4], 1

</llo_original>
